<compile_context>
chip_gen: v5e
topology: v5e:2x2
jax: 0.10.0
libtpu: 0.0.40
codegen_flags: <defaults>
</compile_context>

<pallas_src>
import jax
import jax.numpy as jnp
from jax.experimental import pallas as pl
from jax.experimental.pallas import tpu as pltpu


def _round_up(v, m):
    return ((v + m - 1) // m) * m


def _hw_info():
    """Best-effort hardware query; safe fallbacks if unavailable."""
    vmem_cap = 64 << 20                      # conservative default (v7x-sized)
    try:
        info = pltpu.get_tpu_info()
        vmem_cap = int(getattr(info, "vmem_capacity_bytes", vmem_cap)) or vmem_cap
    except Exception:
        pass
    two_tc = False
    try:
        kind = jax.devices()[0].device_kind.lower()
        two_tc = "v7" in kind                # v7x: 2 TensorCores share the grid
    except Exception:
        pass
    return vmem_cap, two_tc


# --------------------------------------------------------------------------
# Kernel
# --------------------------------------------------------------------------
def _mlp_kernel(x_ref, onehot_ref, w1x_ref, wsub_ref, b1_ref, o_ref):
    # Cast f32 activation tile to bf16 on the VPU (hidden under the MXU);
    # accumulate in f32 on the MXU via preferred_element_type.
    x_bf = x_ref[...].astype(jnp.bfloat16)
    oh_bf = onehot_ref[...].astype(jnp.bfloat16)
    h = jnp.dot(x_bf, w1x_ref[...], preferred_element_type=jnp.float32)
    # Tiny subject-table matmul (K = num_subjects); free filler under the big dot.
    h = h + jnp.dot(oh_bf, wsub_ref[...], preferred_element_type=jnp.float32)
    h = h + b1_ref[...]                                    # bias broadcast (f32)
    o_ref[...] = jnp.maximum(h, 0.0).astype(o_ref.dtype)   # ReLU


# --------------------------------------------------------------------------
# One-time weight preparation (do once, reuse across forward calls)
# --------------------------------------------------------------------------
def prepare_params(w_emb, w1, b1, input_dim, compute_dtype=jnp.bfloat16):
    """Fold the embedding Linear into the backbone and pad only H (lanes).

    Returns (w1x_p [D_in, H_pad], wsub_p [S, H_pad], b1_p [1, H_pad]).
    """
    H = w1.shape[0]
    S = w_emb.shape[1]
    H_pad = _round_up(H, 128)
    w1x_t = w1[:, :input_dim].T.astype(jnp.float32)                        # [D_in, H]
    w_sub = w_emb.T.astype(jnp.float32) @ w1[:, input_dim:].T.astype(jnp.float32)  # [S, H]
    w1x_p = jnp.zeros((input_dim, H_pad), compute_dtype).at[:, :H].set(
        w1x_t.astype(compute_dtype))
    wsub_p = jnp.zeros((S, H_pad), compute_dtype).at[:, :H].set(
        w_sub.astype(compute_dtype))
    b1_p = jnp.zeros((1, H_pad), jnp.float32).at[0, :H].set(b1.astype(jnp.float32))
    return w1x_p, wsub_p, b1_p


# --------------------------------------------------------------------------
# Forward pass with pre-prepared weights
# --------------------------------------------------------------------------
def multisubject_mlp_forward_prepared(x, subject_onehot, w1x_p, wsub_p, b1_p,
                                      hidden_dim=None, *, out_dtype=None,
                                      trim=True):
    B, D_in = x.shape
    S = subject_onehot.shape[1]
    assert w1x_p.shape[0] == D_in and wsub_p.shape[0] == S
    H_pad = w1x_p.shape[1]
    H = hidden_dim if hidden_dim is not None else H_pad
    out_dtype = out_dtype or x.dtype
    out_bytes = jnp.dtype(out_dtype).itemsize

    vmem_cap, two_tc = _hw_info()

    # ---- batch tiling: balanced tiles, generation-aware split ----
    D_geo = _round_up(D_in, 128)                 # lane-padded VMEM geometry
    target_tb = 512 if vmem_cap >= (96 << 20) else 256
    tb, nb = B, 1
    for _ in range(4):
        nb = max(1, pl.cdiv(B, target_tb))
        if two_tc and B >= 16:
            if nb == 1:
                nb = 2                           # give both v7x TensorCores work
            elif nb % 2:
                nb += 1                          # keep the two cores balanced
        if nb == 1:
            tb = B                               # full-extent batch block, no padding
        else:
            tb = _round_up(pl.cdiv(B, nb), 8)    # balanced tiles, <= 7 pad rows each
            nb = pl.cdiv(B, tb)
        # feasibility: double-buffered f32 x tile must leave plenty of VMEM
        if 2 * _round_up(tb, 8) * D_geo * 4 <= int(0.45 * vmem_cap) or target_tb <= 64:
            break
        target_tb = max(64, target_tb // 2)

    # ---- hidden tiling: pipeline weight DMA with compute in the small-batch
    #      (single batch tile) latency regime ----
    if nb == 1 and B <= 64 and H_pad >= 512:
        th = 256
    else:
        th = H_pad
    nh = pl.cdiv(H_pad, th)

    # ---- VMEM budget (conservative: assumes default double buffering) ----
    tb_geo = _round_up(tb, 8)
    x_tile = tb_geo * D_geo * 4
    oh_tile = tb_geo * 128 * 4
    out_tile = tb_geo * th * out_bytes
    acc_tile = tb_geo * th * 4
    w_tile = D_geo * th * 2 + _round_up(S, 8) * th * 2 + th * 4
    need = (2 * (x_tile + oh_tile) + 2 * w_tile + 2 * out_tile
            + x_tile // 2                        # bf16 copy of the x tile
            + acc_tile)                          # f32 accumulator headroom
    vmem_limit = int(min(max(need * 1.4 + (8 << 20), 32 << 20), 0.9 * vmem_cap))

    flops = 2 * B * (D_in + S) * H_pad
    bytes_accessed = (B * D_in * 4 + B * S * 4
                      + D_in * H_pad * 2 + S * H_pad * 2 + H_pad * 4
                      + B * H_pad * out_bytes)

    grid = (nb, nh)

    def build(single_buffer_invariants):
        def spec(shape, imap, invariant):
            if single_buffer_invariants and invariant:
                # grid-invariant block -> a second pipeline buffer is pure waste
                return pl.BlockSpec(shape, imap, pipeline_mode=pl.Buffered(1))
            return pl.BlockSpec(shape, imap)

        in_specs = [
            spec((tb, D_in), lambda i, j: (i, 0), nb == 1),   # x (f32, unpadded)
            spec((tb, S),    lambda i, j: (i, 0), nb == 1),   # onehot (f32)
            spec((D_in, th), lambda i, j: (0, j), nh == 1),   # W1x^T (bf16)
            spec((S, th),    lambda i, j: (0, j), nh == 1),   # subject table (bf16)
            spec((1, th),    lambda i, j: (0, j), nh == 1),   # bias (f32)
        ]
        out_spec = pl.BlockSpec((tb, th), lambda i, j: (i, j))

        return pl.pallas_call(
            _mlp_kernel,
            out_shape=jax.ShapeDtypeStruct((B, H_pad), out_dtype),
            grid_spec=pltpu.PrefetchScalarGridSpec(
                num_scalar_prefetch=0,
                grid=grid,
                in_specs=in_specs,
                out_specs=out_spec),
            compiler_params=pltpu.CompilerParams(
                dimension_semantics=("parallel", "arbitrary"),
                vmem_limit_bytes=vmem_limit),
            cost_estimate=pl.CostEstimate(
                flops=flops, transcendentals=0, bytes_accessed=bytes_accessed),
        )

    try:
        out = build(True)(x, subject_onehot, w1x_p, wsub_p, b1_p)
    except Exception:
        # pl.Buffered(1) unsupported on this jax build -> default buffering.
        out = build(False)(x, subject_onehot, w1x_p, wsub_p, b1_p)

    if trim and H != H_pad:
        # NOTE: this last-dim slice is a strided copy over the whole output;
        # latency-sensitive consumers should pass trim=False and read the
        # lane-dense H_pad slab (padded columns are exactly zero).
        return out[:, :H]
    return out


# --------------------------------------------------------------------------
# Convenience wrapper matching the module signature (prep + forward)
# --------------------------------------------------------------------------
def multisubject_mlp_forward(x, subject_onehot, w_emb, w1, b1, *,
                             out_dtype=None, trim=True):
    """Eval-mode forward of MultiSubjectMLP: returns backbone features [B, H].

    Prepares the folded/padded weights on the fly; for repeated calls use
    prepare_params(...) once + multisubject_mlp_forward_prepared(...).
    """
    D_in = x.shape[1]
    H = w1.shape[0]
    w1x_p, wsub_p, b1_p = prepare_params(w_emb, w1, b1, D_in)
    return multisubject_mlp_forward_prepared(
        x, subject_onehot, w1x_p, wsub_p, b1_p, hidden_dim=H,
        out_dtype=out_dtype, trim=trim)


def _reference(x, subject_onehot, w_emb, w1, b1):
    emb = subject_onehot @ w_emb.T
    x_aug = jnp.concatenate([x, emb], axis=1)
    return jnp.maximum(x_aug @ w1.T + b1, 0.0)


def _run_case(name, B, D_in, E, H, S, key):
    kx, ks, k1, k2, k3 = jax.random.split(key, 5)
    x = jax.random.normal(kx, (B, D_in), dtype=jnp.float32)
    subj_ids = jax.random.randint(ks, (B,), 0, S)
    subject_onehot = jax.nn.one_hot(subj_ids, S, dtype=jnp.float32)

    # Deterministic synthetic parameters (no checkpoint loading).
    w_emb = jax.random.normal(k1, (E, S), dtype=jnp.float32) * 0.1
    w1 = jax.random.normal(k2, (H, D_in + E), dtype=jnp.float32) * 0.05
    b1 = jax.random.normal(k3, (H,), dtype=jnp.float32) * 0.01

    out = multisubject_mlp_forward(x, subject_onehot, w_emb, w1, b1)
    out = jax.block_until_ready(out)

    ref = _reference(x, subject_onehot, w_emb, w1, b1)
    assert out.shape == (B, H), f"{name}: wrong shape {out.shape}"
    # bf16 operands with f32 accumulation -> small quantization error vs f32 ref
    assert jnp.allclose(out, ref, atol=3e-2, rtol=3e-2), f"{name}: mismatch vs reference"


if __name__ == "__main__":
    # Small shapes consistent with the module (scaled down from defaults
    # input_dim=3750, embedding_dim=64, hidden_dim=800, num_subjects=4),
    # deliberately non-aligned to exercise padding/masking paths.
    key = jax.random.PRNGKey(0)
    k_a, k_b, k_c = jax.random.split(key, 3)

    # Primary: single batch tile, H padded 120 -> 128.
    _run_case("base", B=10, D_in=380, E=64, H=120, S=4, key=k_a)
    # Small-batch latency path: hidden-dim tiling (th=256, partial last tile).
    _run_case("h_tiled", B=12, D_in=256, E=32, H=640, S=4, key=k_b)
    # Multi batch-tile path with a partial (masked) boundary block and S != 4.
    _run_case("multi_tile", B=530, D_in=72, E=16, H=96, S=3, key=k_c)

    print("KERNEL_OK")
</pallas_src>

<mosaic_0001>
module attributes {stable_mosaic.version = 11 : i64} {
  func.func @_mlp_kernel(%arg0: i32, %arg1: i32, %arg2: memref<10x380xf32, #tpu.memory_space<vmem>>, %arg3: memref<10x4xf32, #tpu.memory_space<vmem>>, %arg4: memref<380x128xbf16, #tpu.memory_space<vmem>>, %arg5: memref<4x128xbf16, #tpu.memory_space<vmem>>, %arg6: memref<1x128xf32, #tpu.memory_space<vmem>>, %arg7: memref<10x128xf32, #tpu.memory_space<vmem>>) attributes {dimension_semantics = [#tpu.dimension_semantics<parallel>, #tpu.dimension_semantics<arbitrary>], iteration_bounds = array<i64: 1, 1>, scalar_prefetch = 0 : i64, scratch_operands = 0 : i64, tpu.core_type = #tpu.core_type<tc>, window_params = [{pipeline_mode = #tpu.pipeline_mode<synchronous>, transform_indices = @transform_0, window_bounds = array<i64: 10, 380>}, {pipeline_mode = #tpu.pipeline_mode<synchronous>, transform_indices = @transform_1, window_bounds = array<i64: 10, 4>}, {pipeline_mode = #tpu.pipeline_mode<synchronous>, transform_indices = @transform_2, window_bounds = array<i64: 380, 128>}, {pipeline_mode = #tpu.pipeline_mode<synchronous>, transform_indices = @transform_3, window_bounds = array<i64: 4, 128>}, {pipeline_mode = #tpu.pipeline_mode<synchronous>, transform_indices = @transform_4, window_bounds = array<i64: 1, 128>}, {transform_indices = @transform_5, window_bounds = array<i64: 10, 128>}]} {
    %c0 = arith.constant 0 : index
    %c0_0 = arith.constant 0 : index
    %0 = vector.load %arg2[%c0, %c0_0] : memref<10x380xf32, #tpu.memory_space<vmem>>, vector<10x380xf32>
    %1 = arith.truncf %0 : vector<10x380xf32> to vector<10x380xbf16>
    %c0_1 = arith.constant 0 : index
    %c0_2 = arith.constant 0 : index
    %2 = vector.load %arg3[%c0_1, %c0_2] : memref<10x4xf32, #tpu.memory_space<vmem>>, vector<10x4xf32>
    %3 = arith.truncf %2 : vector<10x4xf32> to vector<10x4xbf16>
    %c0_3 = arith.constant 0 : index
    %c0_4 = arith.constant 0 : index
    %4 = vector.load %arg4[%c0_3, %c0_4] : memref<380x128xbf16, #tpu.memory_space<vmem>>, vector<380x128xbf16>
    %cst = arith.constant dense<0.000000e+00> : vector<10x128xf32>
    %5 = tpu.matmul %1, %4, %cst {dimension_numbers = #tpu.dot_dimension_numbers<[1], [0], [0], [1], [0, 0, 1, 1], [], []>} : vector<10x380xbf16>, vector<380x128xbf16>, vector<10x128xf32> -> vector<10x128xf32>
    %c0_5 = arith.constant 0 : index
    %c0_6 = arith.constant 0 : index
    %6 = vector.load %arg5[%c0_5, %c0_6] : memref<4x128xbf16, #tpu.memory_space<vmem>>, vector<4x128xbf16>
    %cst_7 = arith.constant dense<0.000000e+00> : vector<10x128xf32>
    %7 = tpu.matmul %3, %6, %cst_7 {dimension_numbers = #tpu.dot_dimension_numbers<[1], [0], [0], [1], [0, 0, 1, 1], [], []>} : vector<10x4xbf16>, vector<4x128xbf16>, vector<10x128xf32> -> vector<10x128xf32>
    %8 = arith.addf %5, %7 : vector<10x128xf32>
    %c0_8 = arith.constant 0 : index
    %c0_9 = arith.constant 0 : index
    %9 = vector.load %arg6[%c0_8, %c0_9] : memref<1x128xf32, #tpu.memory_space<vmem>>, vector<1x128xf32>
    %10 = vector.broadcast %9 : vector<1x128xf32> to vector<10x128xf32>
    %11 = arith.addf %8, %10 : vector<10x128xf32>
    %cst_10 = arith.constant 0.000000e+00 : f32
    %12 = vector.broadcast %cst_10 : f32 to vector<10x128xf32>
    %13 = arith.maximumf %11, %12 : vector<10x128xf32>
    %c0_11 = arith.constant 0 : index
    %c0_12 = arith.constant 0 : index
    %14 = vector.load %arg7[%c0_11, %c0_12] : memref<10x128xf32, #tpu.memory_space<vmem>>, vector<10x128xf32>
    tpu.vector_store %arg7[%c0_11, %c0_12], %13 {strides = array<i32>} : memref<10x128xf32, #tpu.memory_space<vmem>>, vector<10x128xf32>,
    return
  }
  func.func @transform_0(%arg0: i32, %arg1: i32) -> (i32, i32) {
    %c0_i32 = arith.constant 0 : i32
    %c0_i32_0 = arith.constant 0 : i32
    return %arg0, %c0_i32 : i32, i32
  }
  func.func @transform_1(%arg0: i32, %arg1: i32) -> (i32, i32) {
    %c0_i32 = arith.constant 0 : i32
    %c0_i32_0 = arith.constant 0 : i32
    return %arg0, %c0_i32 : i32, i32
  }
  func.func @transform_2(%arg0: i32, %arg1: i32) -> (i32, i32) {
    %c0_i32 = arith.constant 0 : i32
    %c0_i32_0 = arith.constant 0 : i32
    return %c0_i32, %arg1 : i32, i32
  }
  func.func @transform_3(%arg0: i32, %arg1: i32) -> (i32, i32) {
    %c0_i32 = arith.constant 0 : i32
    %c0_i32_0 = arith.constant 0 : i32
    return %c0_i32, %arg1 : i32, i32
  }
  func.func @transform_4(%arg0: i32, %arg1: i32) -> (i32, i32) {
    %c0_i32 = arith.constant 0 : i32
    %c0_i32_0 = arith.constant 0 : i32
    return %c0_i32, %arg1 : i32, i32
  }
  func.func @transform_5(%arg0: i32, %arg1: i32) -> (i32, i32) {
    %c0_i32 = arith.constant 0 : i32
    return %arg0, %arg1 : i32, i32
  }
}

module attributes {stable_mosaic.version = 11 : i64} {
  func.func @_mlp_kernel(%arg0: i32, %arg1: i32, %arg2: memref<10x380xf32, #tpu.memory_space<vmem>>, %arg3: memref<10x4xf32, #tpu.memory_space<vmem>>, %arg4: memref<380x128xbf16, #tpu.memory_space<vmem>>, %arg5: memref<4x128xbf16, #tpu.memory_space<vmem>>, %arg6: memref<1x128xf32, #tpu.memory_space<vmem>>, %arg7: memref<10x128xf32, #tpu.memory_space<vmem>>) attributes {dimension_semantics = [#tpu.dimension_semantics<parallel>, #tpu.dimension_semantics<arbitrary>], iteration_bounds = array<i64: 1, 1>, scalar_prefetch = 0 : i64, scratch_operands = 0 : i64, tpu.core_type = #tpu.core_type<tc>, window_params = [{transform_indices = @transform_0, window_bounds = array<i64: 10, 380>}, {transform_indices = @transform_1, window_bounds = array<i64: 10, 4>}, {transform_indices = @transform_2, window_bounds = array<i64: 380, 128>}, {transform_indices = @transform_3, window_bounds = array<i64: 4, 128>}, {transform_indices = @transform_4, window_bounds = array<i64: 1, 128>}, {transform_indices = @transform_5, window_bounds = array<i64: 10, 128>}]} {
    %c0 = arith.constant 0 : index
    %c0_0 = arith.constant 0 : index
    %0 = vector.load %arg2[%c0, %c0_0] : memref<10x380xf32, #tpu.memory_space<vmem>>, vector<10x380xf32>
    %1 = arith.truncf %0 : vector<10x380xf32> to vector<10x380xbf16>
    %c0_1 = arith.constant 0 : index
    %c0_2 = arith.constant 0 : index
    %2 = vector.load %arg3[%c0_1, %c0_2] : memref<10x4xf32, #tpu.memory_space<vmem>>, vector<10x4xf32>
    %3 = arith.truncf %2 : vector<10x4xf32> to vector<10x4xbf16>
    %c0_3 = arith.constant 0 : index
    %c0_4 = arith.constant 0 : index
    %4 = vector.load %arg4[%c0_3, %c0_4] : memref<380x128xbf16, #tpu.memory_space<vmem>>, vector<380x128xbf16>
    %cst = arith.constant dense<0.000000e+00> : vector<10x128xf32>
    %5 = tpu.matmul %1, %4, %cst {dimension_numbers = #tpu.dot_dimension_numbers<[1], [0], [0], [1], [0, 0, 1, 1], [], []>} : vector<10x380xbf16>, vector<380x128xbf16>, vector<10x128xf32> -> vector<10x128xf32>
    %c0_5 = arith.constant 0 : index
    %c0_6 = arith.constant 0 : index
    %6 = vector.load %arg5[%c0_5, %c0_6] : memref<4x128xbf16, #tpu.memory_space<vmem>>, vector<4x128xbf16>
    %cst_7 = arith.constant dense<0.000000e+00> : vector<10x128xf32>
    %7 = tpu.matmul %3, %6, %cst_7 {dimension_numbers = #tpu.dot_dimension_numbers<[1], [0], [0], [1], [0, 0, 1, 1], [], []>} : vector<10x4xbf16>, vector<4x128xbf16>, vector<10x128xf32> -> vector<10x128xf32>
    %8 = arith.addf %5, %7 : vector<10x128xf32>
    %c0_8 = arith.constant 0 : index
    %c0_9 = arith.constant 0 : index
    %9 = vector.load %arg6[%c0_8, %c0_9] : memref<1x128xf32, #tpu.memory_space<vmem>>, vector<1x128xf32>
    %10 = vector.broadcast %9 : vector<1x128xf32> to vector<10x128xf32>
    %11 = arith.addf %8, %10 : vector<10x128xf32>
    %cst_10 = arith.constant 0.000000e+00 : f32
    %12 = vector.broadcast %cst_10 : f32 to vector<10x128xf32>
    %13 = arith.maximumf %11, %12 : vector<10x128xf32>
    %c0_11 = arith.constant 0 : index
    %c0_12 = arith.constant 0 : index
    %14 = vector.load %arg7[%c0_11, %c0_12] : memref<10x128xf32, #tpu.memory_space<vmem>>, vector<10x128xf32>
    tpu.vector_store %arg7[%c0_11, %c0_12], %13 {strides = array<i32>} : memref<10x128xf32, #tpu.memory_space<vmem>>, vector<10x128xf32>,
    return
  }
  func.func @transform_0(%arg0: i32, %arg1: i32) -> (i32, i32) {
    %c0_i32 = arith.constant 0 : i32
    %c0_i32_0 = arith.constant 0 : i32
    return %arg0, %c0_i32 : i32, i32
  }
  func.func @transform_1(%arg0: i32, %arg1: i32) -> (i32, i32) {
    %c0_i32 = arith.constant 0 : i32
    %c0_i32_0 = arith.constant 0 : i32
    return %arg0, %c0_i32 : i32, i32
  }
  func.func @transform_2(%arg0: i32, %arg1: i32) -> (i32, i32) {
    %c0_i32 = arith.constant 0 : i32
    %c0_i32_0 = arith.constant 0 : i32
    return %c0_i32, %arg1 : i32, i32
  }
  func.func @transform_3(%arg0: i32, %arg1: i32) -> (i32, i32) {
    %c0_i32 = arith.constant 0 : i32
    %c0_i32_0 = arith.constant 0 : i32
    return %c0_i32, %arg1 : i32, i32
  }
  func.func @transform_4(%arg0: i32, %arg1: i32) -> (i32, i32) {
    %c0_i32 = arith.constant 0 : i32
    %c0_i32_0 = arith.constant 0 : i32
    return %c0_i32, %arg1 : i32, i32
  }
  func.func @transform_5(%arg0: i32, %arg1: i32) -> (i32, i32) {
    %c0_i32 = arith.constant 0 : i32
    return %arg0, %arg1 : i32, i32
  }
}

</mosaic_0001>

<llo_original>
// kernel: tpu_custom_call.1
$region0: #{tpu_custom_call.1}
  #allocation0 [shape = 'u32[]', space=smem, size = 0x4, offset = 0x4, fixed_abs, tag = 'smem constant byte address 0x4 - core index']
  #allocation1 [shape = 'u32[72,128]{1,0:T(1,128)}', space=vmem, size = 0x9000, scoped, tag = 'internal scratch']
  %s0 = inlined_call_operand.hbm [shape: f32[10,380], index: 0, kind: input, shape index: {}]
  %s1 = inlined_call_operand.vmem [shape: f32[10,4], index: 1, kind: input, shape index: {}]
  %s2 = inlined_call_operand.hbm [shape: bf16[380,128], index: 2, kind: input, shape index: {}]
  %s3 = inlined_call_operand.vmem [shape: bf16[4,128], index: 3, kind: input, shape index: {}]
  %s4 = inlined_call_operand.vmem [shape: f32[1,128], index: 4, kind: input, shape index: {}]
  %s5 = inlined_call_operand.hbm [shape: f32[10,128], index: 5, kind: output, shape index: {}]
  %s6 = sld [smem:[#allocation0]]
  $region38: #{tpu_custom_call.1} parent=0
    _
  %s8 = ssub.s32 1, %s6
  %s9 = scalar_select 0, %s8, %s6
  $region1: #{tpu_custom_call.1} parent=0
    #allocation2 [shape = 'u8[24576]{0}', space=vmem, size = 0x6000, scoped, tag = 'input window, operand 0, single buffered']
    #allocation3 [shape = 's32[1]{0}', space=sflag, size = 0x4, scoped, tag = 'scoped memory for tpu_custom_call.1']
    #allocation4 [shape = 's32[1]{0}', space=sflag, size = 0x4, scoped, tag = 'scoped memory for tpu_custom_call.1']
    #allocation5 [shape = 'u8[98304]{0}', space=vmem, size = 0x18000, scoped, tag = 'input window, operand 2, single buffered']
    #allocation6 [shape = 's32[1]{0}', space=sflag, size = 0x4, scoped, tag = 'scoped memory for tpu_custom_call.1']
    #allocation7 [shape = 'u8[8192]{0}', space=vmem, size = 0x2000, scoped, tag = 'output window, operand 0, single buffered']
    %10 = vsyncpa [#allocation3], 0
    %11 = vsyncpa [#allocation6], 0
    %12 = vsyncpa [#allocation4], 0
    // Predicated region
    $region2: #{tpu_custom_call.1} parent=1 // pred_check
      _
    $region3: #{tpu_custom_call.1} parent=1 // pred_check_branch
      %14 = sbr.rel (0) target = $region5
    $region4: #{tpu_custom_call.1} parent=1 // pred_region
      %16 = vsyncadd [#allocation3], 0
      %s17 = sshll.u32 %s0, 4
      %s18 = int_to_ptr.hbm [resolvable:$true] %s17
      %s19 = sshll.u32 [#allocation2], 4
      %s20 = int_to_ptr.vmem [resolvable:$true] %s19
      %25 = dma.hbm_to_vmem [thread:$0]  %s18, 768, %s20, [#allocation3], 384, 384, 24
    $region5: #{tpu_custom_call.1} parent=1 // pred_fallthru
      _
    // Predicated region
    $region6: #{tpu_custom_call.1} parent=1 // pred_check
      _
    $region7: #{tpu_custom_call.1} parent=1 // pred_check_branch
      %27 = sbr.rel (0) target = $region9
    $region8: #{tpu_custom_call.1} parent=1 // pred_region
      _
    $region9: #{tpu_custom_call.1} parent=1 // pred_fallthru
      _
    // Predicated region
    $region10: #{tpu_custom_call.1} parent=1 // pred_check
      _
    $region11: #{tpu_custom_call.1} parent=1 // pred_check_branch
      %29 = sbr.rel (0) target = $region13
    $region12: #{tpu_custom_call.1} parent=1 // pred_region
      %31 = vsyncadd [#allocation6], 0
      %s32 = sshll.u32 %s2, 4
      %s33 = int_to_ptr.hbm [resolvable:$true] %s32
      %s34 = sshll.u32 [#allocation5], 4
      %s35 = int_to_ptr.vmem [resolvable:$true] %s34
      %40 = dma.hbm_to_vmem [thread:$0]  %s33, 3072, %s35, [#allocation6], 64, 64, 4
    $region13: #{tpu_custom_call.1} parent=1 // pred_fallthru
      _
    // Predicated region
    $region14: #{tpu_custom_call.1} parent=1 // pred_check
      _
    $region15: #{tpu_custom_call.1} parent=1 // pred_check_branch
      %42 = sbr.rel (0) target = $region17
    $region16: #{tpu_custom_call.1} parent=1 // pred_region
      _
    $region17: #{tpu_custom_call.1} parent=1 // pred_fallthru
      _
    // Predicated region
    $region18: #{tpu_custom_call.1} parent=1 // pred_check
      _
    $region19: #{tpu_custom_call.1} parent=1 // pred_check_branch
      %44 = sbr.rel (0) target = $region21
    $region20: #{tpu_custom_call.1} parent=1 // pred_region
      _
    $region21: #{tpu_custom_call.1} parent=1 // pred_fallthru
      _
    // Predicated region
    $region22: #{tpu_custom_call.1} parent=1 // pred_check
      _
    $region23: #{tpu_custom_call.1} parent=1 // pred_check_branch
      %46 = sbr.rel (0) target = $region25
    $region24: #{tpu_custom_call.1} parent=1 // pred_region
      %48 = dma.done [#allocation3], 768
    $region25: #{tpu_custom_call.1} parent=1 // pred_fallthru
      _
    // Predicated region
    $region26: #{tpu_custom_call.1} parent=1 // pred_check
      _
    $region27: #{tpu_custom_call.1} parent=1 // pred_check_branch
      %50 = sbr.rel (0) target = $region29
    $region28: #{tpu_custom_call.1} parent=1 // pred_region
      %52 = dma.done [#allocation6], 3072
    $region29: #{tpu_custom_call.1} parent=1 // pred_fallthru
      _
    %v54 = vld [vmem:[#allocation2] sm:$0xff]
    %v55 = vld [vmem:[#allocation2 + $0x8] sm:$0xff]
    %v56 = vld [vmem:[#allocation2 + $0x10] sm:$0xff]
    %v57 = vld [vmem:[#allocation2 + $0x18] sm:$0x3]
    %v58 = vld [vmem:[#allocation2 + $0x20] sm:$0x3]
    %v59 = vld [vmem:[#allocation2 + $0x28] sm:$0x3]
    %v60 = vpack.c.bf16 %v57, %v54
    %v61 = vpack.c.bf16 %v58, %v55
    %v62 = vpack.c.bf16 %v59, %v56
    %v63 = vld [vmem:[%s1] sm:$0xff]
    %v64 = vld [vmem:[%s1 + $0x8] sm:$0x3]
    %v65 = vpack.c.bf16 %v64, %v63
    %v66 = vld [vmem:[#allocation5] sm:$0xf]
    %v67 = vld [vmem:[#allocation5 + $0x4] sm:$0xf]
    %v68 = vld [vmem:[#allocation5 + $0x8] sm:$0xf]
    %v69 = vld [vmem:[#allocation5 + $0xc] sm:$0xf]
    %v70 = vld [vmem:[#allocation5 + $0x10] sm:$0xf]
    %v71 = vld [vmem:[#allocation5 + $0x14] sm:$0xf]
    %v72 = vld [vmem:[#allocation5 + $0x18] sm:$0xf]
    %v73 = vld [vmem:[#allocation5 + $0x1c] sm:$0xf]
    %v74 = vld [vmem:[#allocation5 + $0x20] sm:$0xf]
    %v75 = vld [vmem:[#allocation5 + $0x24] sm:$0xf]
    %v76 = vld [vmem:[#allocation5 + $0x28] sm:$0xf]
    %v77 = vld [vmem:[#allocation5 + $0x2c] sm:$0xf]
    %v78 = vld [vmem:[#allocation5 + $0x30] sm:$0xf]
    %v79 = vld [vmem:[#allocation5 + $0x34] sm:$0xf]
    %v80 = vld [vmem:[#allocation5 + $0x38] sm:$0xf]
    %v81 = vld [vmem:[#allocation5 + $0x3c] sm:$0xf]
    %v82 = vld [vmem:[#allocation5 + $0x40] sm:$0xf]
    %v83 = vld [vmem:[#allocation5 + $0x44] sm:$0xf]
    %v84 = vld [vmem:[#allocation5 + $0x48] sm:$0xf]
    %v85 = vld [vmem:[#allocation5 + $0x4c] sm:$0xf]
    %v86 = vld [vmem:[#allocation5 + $0x50] sm:$0xf]
    %v87 = vld [vmem:[#allocation5 + $0x54] sm:$0xf]
    %v88 = vld [vmem:[#allocation5 + $0x58] sm:$0xf]
    %v89 = vld [vmem:[#allocation5 + $0x5c] sm:$0xf]
    %v90 = vld [vmem:[#allocation5 + $0x60] sm:$0xf]
    %v91 = vld [vmem:[#allocation5 + $0x64] sm:$0xf]
    %v92 = vld [vmem:[#allocation5 + $0x68] sm:$0xf]
    %v93 = vld [vmem:[#allocation5 + $0x6c] sm:$0xf]
    %v94 = vld [vmem:[#allocation5 + $0x70] sm:$0xf]
    %v95 = vld [vmem:[#allocation5 + $0x74] sm:$0xf]
    %v96 = vld [vmem:[#allocation5 + $0x78] sm:$0xf]
    %v97 = vld [vmem:[#allocation5 + $0x7c] sm:$0xf]
    %v98 = vld [vmem:[#allocation5 + $0x80] sm:$0xf]
    %v99 = vld [vmem:[#allocation5 + $0x84] sm:$0xf]
    %v100 = vld [vmem:[#allocation5 + $0x88] sm:$0xf]
    %v101 = vld [vmem:[#allocation5 + $0x8c] sm:$0xf]
    %v102 = vld [vmem:[#allocation5 + $0x90] sm:$0xf]
    %v103 = vld [vmem:[#allocation5 + $0x94] sm:$0xf]
    %v104 = vld [vmem:[#allocation5 + $0x98] sm:$0xf]
    %v105 = vld [vmem:[#allocation5 + $0x9c] sm:$0xf]
    %v106 = vld [vmem:[#allocation5 + $0xa0] sm:$0xf]
    %v107 = vld [vmem:[#allocation5 + $0xa4] sm:$0xf]
    %v108 = vld [vmem:[#allocation5 + $0xa8] sm:$0xf]
    %v109 = vld [vmem:[#allocation5 + $0xac] sm:$0xf]
    %v110 = vld [vmem:[#allocation5 + $0xb0] sm:$0xf]
    %v111 = vld [vmem:[#allocation5 + $0xb4] sm:$0xf]
    %v112 = vld [vmem:[#allocation5 + $0xb8] sm:$0xf]
    %v113 = vld [vmem:[#allocation5 + $0xbc] sm:$0x3]
    %v114 = vld [vmem:[%s3] sm:$0x3]
    %vm115 = vcmask 31744
    %v117 = vsel %vm115, %v65, 0
    %vm119 = vcmask 1041408
    %v121 = vsel %vm119, %v114, 0
    %123 = vmatpush.bf16.msra.mxu0 0
    %124 = vmatpush.bf16.msra.mxu0 0
    %125 = vmatpush.bf16.msra.mxu0 0
    %126 = vmatpush.bf16.msra.mxu0 0
    %127 = vmatpush.bf16.msra.mxu0 0
    %128 = vmatpush.bf16.msra.mxu0 0
    %129 = vmatpush.bf16.msra.mxu0 0
    %130 = vmatpush.bf16.msra.mxu0 %v121
    %131 = vmatmul.bf16.gmra.mxu0 %v117
    %v132 = vpop.f32.mrf.mxu0
    %v133 = vadd.f32 0.0, %v132
    %v134 = vpop.f32.mrf.mxu0
    %v135 = vadd.f32 0.0, %v134
    %136 = vdwg.mxu0
    %v185 = vunpack.c.l.b16 %v66
    %v186 = vunpack.c.l.b16 %v67
    %v187 = vunpack.c.l.b16 %v68
    %v188 = vunpack.c.l.b16 %v69
    %v189 = vunpack.c.l.b16 %v70
    %v190 = vunpack.c.l.b16 %v71
    %v191 = vunpack.c.l.b16 %v72
    %v192 = vunpack.c.l.b16 %v73
    %v193 = vunpack.c.l.b16 %v74
    %v194 = vunpack.c.l.b16 %v75
    %v195 = vunpack.c.l.b16 %v76
    %v196 = vunpack.c.l.b16 %v77
    %v197 = vunpack.c.l.b16 %v78
    %v198 = vunpack.c.l.b16 %v79
    %v199 = vunpack.c.l.b16 %v80
    %v200 = vunpack.c.l.b16 %v81
    %v201 = vunpack.c.l.b16 %v82
    %v202 = vunpack.c.l.b16 %v83
    %v203 = vunpack.c.l.b16 %v84
    %v204 = vunpack.c.l.b16 %v85
    %v205 = vunpack.c.l.b16 %v86
    %v206 = vunpack.c.l.b16 %v87
    %v207 = vunpack.c.l.b16 %v88
    %v208 = vunpack.c.l.b16 %v89
    %v209 = vunpack.c.l.b16 %v90
    %v210 = vunpack.c.l.b16 %v91
    %v211 = vunpack.c.l.b16 %v92
    %v212 = vunpack.c.l.b16 %v93
    %v213 = vunpack.c.l.b16 %v94
    %v214 = vunpack.c.l.b16 %v95
    %v215 = vunpack.c.l.b16 %v96
    %v216 = vunpack.c.l.b16 %v97
    %v217 = vunpack.c.l.b16 %v98
    %v218 = vunpack.c.l.b16 %v99
    %v219 = vunpack.c.l.b16 %v100
    %v220 = vunpack.c.l.b16 %v101
    %v221 = vunpack.c.l.b16 %v102
    %v222 = vunpack.c.l.b16 %v103
    %v223 = vunpack.c.l.b16 %v104
    %v224 = vunpack.c.l.b16 %v105
    %v225 = vunpack.c.l.b16 %v106
    %v226 = vunpack.c.l.b16 %v107
    %v227 = vunpack.c.l.b16 %v108
    %v228 = vunpack.c.l.b16 %v109
    %v229 = vunpack.c.l.b16 %v110
    %v230 = vunpack.c.l.b16 %v111
    %v231 = vunpack.c.l.b16 %v112
    %v232 = vunpack.c.l.b16 %v113
    %v233 = vpack.c.b16 %v186, %v185
    %v234 = vpack.c.b16 %v188, %v187
    %v235 = vpack.c.b16 %v190, %v189
    %v236 = vpack.c.b16 %v192, %v191
    %v237 = vpack.c.b16 %v194, %v193
    %v238 = vpack.c.b16 %v196, %v195
    %v239 = vpack.c.b16 %v198, %v197
    %v240 = vpack.c.b16 %v200, %v199
    %v241 = vpack.c.b16 %v202, %v201
    %v242 = vpack.c.b16 %v204, %v203
    %v243 = vpack.c.b16 %v206, %v205
    %v244 = vpack.c.b16 %v208, %v207
    %v245 = vpack.c.b16 %v210, %v209
    %v246 = vpack.c.b16 %v212, %v211
    %v247 = vpack.c.b16 %v214, %v213
    %v248 = vpack.c.b16 %v216, %v215
    %v249 = vpack.c.b16 %v218, %v217
    %v250 = vpack.c.b16 %v220, %v219
    %v251 = vpack.c.b16 %v222, %v221
    %v252 = vpack.c.b16 %v224, %v223
    %v253 = vpack.c.b16 %v226, %v225
    %v254 = vpack.c.b16 %v228, %v227
    %v255 = vpack.c.b16 %v230, %v229
    %v256 = vpack.c.b16 %v232, %v231
    %vm280 = vcmask 1014784
    %v282 = vsel %vm280, %v62, 0
    %vm284 = vcmask 1045504
    %v286 = vsel %vm284, %v256, 0
    %288 = vmatpush.bf16.msra.mxu0 %v240
    %289 = vmatpush.bf16.msra.mxu0 %v239
    %290 = vmatpush.bf16.msra.mxu0 %v238
    %291 = vmatpush.bf16.msra.mxu0 %v237
    %292 = vmatpush.bf16.msra.mxu0 %v236
    %293 = vmatpush.bf16.msra.mxu0 %v235
    %294 = vmatpush.bf16.msra.mxu0 %v234
    %295 = vmatpush.bf16.msra.mxu0 %v233
    %296 = vmatmul.bf16.gmra.mxu0 %v60
    %v297 = vpop.f32.mrf.mxu0
    %v298 = vadd.f32 %v133, %v297
    %v299 = vpop.f32.mrf.mxu0
    %v300 = vadd.f32 %v135, %v299
    %301 = vdwg.mxu0
    %302 = vmatpush.bf16.msra.mxu0 %v248
    %303 = vmatpush.bf16.msra.mxu0 %v247
    %304 = vmatpush.bf16.msra.mxu0 %v246
    %305 = vmatpush.bf16.msra.mxu0 %v245
    %306 = vmatpush.bf16.msra.mxu0 %v244
    %307 = vmatpush.bf16.msra.mxu0 %v243
    %308 = vmatpush.bf16.msra.mxu0 %v242
    %309 = vmatpush.bf16.msra.mxu0 %v241
    %310 = vmatmul.bf16.gmra.mxu0 %v61
    %v311 = vpop.f32.mrf.mxu0
    %v312 = vadd.f32 %v298, %v311
    %v313 = vpop.f32.mrf.mxu0
    %v314 = vadd.f32 %v300, %v313
    %315 = vdwg.mxu0
    %316 = vmatpush.bf16.msra.mxu0 %v286
    %317 = vmatpush.bf16.msra.mxu0 %v255
    %318 = vmatpush.bf16.msra.mxu0 %v254
    %319 = vmatpush.bf16.msra.mxu0 %v253
    %320 = vmatpush.bf16.msra.mxu0 %v252
    %321 = vmatpush.bf16.msra.mxu0 %v251
    %322 = vmatpush.bf16.msra.mxu0 %v250
    %323 = vmatpush.bf16.msra.mxu0 %v249
    %324 = vmatmul.bf16.gmra.mxu0 %v282
    %v325 = vpop.f32.mrf.mxu0
    %v326 = vadd.f32 %v312, %v325
    %v327 = vpop.f32.mrf.mxu0
    %v328 = vadd.f32 %v314, %v327
    %329 = vdwg.mxu0
    %v330 = vld [vmem:[%s4] sm:$0x1]
    %v332 = vperm.slane %v330, 0
    %v334 = vadd.f32 %v326, %v332
    %v335 = vadd.f32 %v328, %v332
    %v336 = vmax.f32 %v334, 0.0
    %v337 = vmax.f32 %v335, 0.0
    %338 = vst [vmem:[#allocation7] sm:$0xff] %v336
    %339 = vst [vmem:[#allocation7 + $0x8] sm:$0x3] %v337
    // Predicated region
    $region30: #{tpu_custom_call.1} parent=1 // pred_check
      _
    $region31: #{tpu_custom_call.1} parent=1 // pred_check_branch
      %341 = sbr.rel (0) target = $region33
    $region32: #{tpu_custom_call.1} parent=1 // pred_region
      %343 = vsyncadd [#allocation4], 0
      %s344 = sshll.u32 [#allocation7], 4
      %s345 = int_to_ptr.vmem [resolvable:$true] %s344
      %s346 = sshll.u32 %s5, 4
      %s347 = int_to_ptr.hbm [resolvable:$true] %s346
      %352 = dma.vmem_to_hbm [thread:$0]  %s345, 256, %s347, [#allocation4], 128, 128, 8
    $region33: #{tpu_custom_call.1} parent=1 // pred_fallthru
      _
    // Predicated region
    $region34: #{tpu_custom_call.1} parent=1 // pred_check
      _
    $region35: #{tpu_custom_call.1} parent=1 // pred_check_branch
      %354 = sbr.rel (0) target = $region37
    $region36: #{tpu_custom_call.1} parent=1 // pred_region
      %356 = dma.done [#allocation4], 256
    $region37: #{tpu_custom_call.1} parent=1 // pred_fallthru
      _
    %357 = vsyncpa [#allocation3], 1
    %358 = vsyncpa [#allocation6], 1
    %359 = vsyncpa [#allocation4], 1

// kernel: tpu_custom_call.1
$region0: #{tpu_custom_call.1}
  #allocation0 [shape = 'u32[]', space=smem, size = 0x4, offset = 0x4, fixed_abs, tag = 'smem constant byte address 0x4 - core index']
  #allocation1 [shape = 'u32[72,128]{1,0:T(1,128)}', space=vmem, size = 0x9000, scoped, tag = 'internal scratch']
  %s0 = inlined_call_operand.hbm [shape: f32[10,380], index: 0, kind: input, shape index: {}]
  %s1 = inlined_call_operand.vmem [shape: f32[10,4], index: 1, kind: input, shape index: {}]
  %s2 = inlined_call_operand.hbm [shape: bf16[380,128], index: 2, kind: input, shape index: {}]
  %s3 = inlined_call_operand.vmem [shape: bf16[4,128], index: 3, kind: input, shape index: {}]
  %s4 = inlined_call_operand.vmem [shape: f32[1,128], index: 4, kind: input, shape index: {}]
  %s5 = inlined_call_operand.hbm [shape: f32[10,128], index: 5, kind: output, shape index: {}]
  %s6 = sld [smem:[#allocation0]]
  $region38: #{tpu_custom_call.1} parent=0
    _
  %s8 = ssub.s32 1, %s6
  %s9 = scalar_select 0, %s8, %s6
  $region1: #{tpu_custom_call.1} parent=0
    #allocation2 [shape = 'u8[24576]{0}', space=vmem, size = 0x6000, scoped, tag = 'input window, operand 0, single buffered']
    #allocation3 [shape = 's32[1]{0}', space=sflag, size = 0x4, scoped, tag = 'scoped memory for tpu_custom_call.1']
    #allocation4 [shape = 's32[1]{0}', space=sflag, size = 0x4, scoped, tag = 'scoped memory for tpu_custom_call.1']
    #allocation5 [shape = 'u8[98304]{0}', space=vmem, size = 0x18000, scoped, tag = 'input window, operand 2, single buffered']
    #allocation6 [shape = 's32[1]{0}', space=sflag, size = 0x4, scoped, tag = 'scoped memory for tpu_custom_call.1']
    #allocation7 [shape = 'u8[8192]{0}', space=vmem, size = 0x2000, scoped, tag = 'output window, operand 0, single buffered']
    %10 = vsyncpa [#allocation3], 0
    %11 = vsyncpa [#allocation6], 0
    %12 = vsyncpa [#allocation4], 0
    // Predicated region
    $region2: #{tpu_custom_call.1} parent=1 // pred_check
      _
    $region3: #{tpu_custom_call.1} parent=1 // pred_check_branch
      %14 = sbr.rel (0) target = $region5
    $region4: #{tpu_custom_call.1} parent=1 // pred_region
      %16 = vsyncadd [#allocation3], 0
      %s17 = sshll.u32 %s0, 4
      %s18 = int_to_ptr.hbm [resolvable:$true] %s17
      %s19 = sshll.u32 [#allocation2], 4
      %s20 = int_to_ptr.vmem [resolvable:$true] %s19
      %25 = dma.hbm_to_vmem [thread:$0]  %s18, 768, %s20, [#allocation3], 384, 384, 24
    $region5: #{tpu_custom_call.1} parent=1 // pred_fallthru
      _
    // Predicated region
    $region6: #{tpu_custom_call.1} parent=1 // pred_check
      _
    $region7: #{tpu_custom_call.1} parent=1 // pred_check_branch
      %27 = sbr.rel (0) target = $region9
    $region8: #{tpu_custom_call.1} parent=1 // pred_region
      _
    $region9: #{tpu_custom_call.1} parent=1 // pred_fallthru
      _
    // Predicated region
    $region10: #{tpu_custom_call.1} parent=1 // pred_check
      _
    $region11: #{tpu_custom_call.1} parent=1 // pred_check_branch
      %29 = sbr.rel (0) target = $region13
    $region12: #{tpu_custom_call.1} parent=1 // pred_region
      %31 = vsyncadd [#allocation6], 0
      %s32 = sshll.u32 %s2, 4
      %s33 = int_to_ptr.hbm [resolvable:$true] %s32
      %s34 = sshll.u32 [#allocation5], 4
      %s35 = int_to_ptr.vmem [resolvable:$true] %s34
      %40 = dma.hbm_to_vmem [thread:$0]  %s33, 3072, %s35, [#allocation6], 64, 64, 4
    $region13: #{tpu_custom_call.1} parent=1 // pred_fallthru
      _
    // Predicated region
    $region14: #{tpu_custom_call.1} parent=1 // pred_check
      _
    $region15: #{tpu_custom_call.1} parent=1 // pred_check_branch
      %42 = sbr.rel (0) target = $region17
    $region16: #{tpu_custom_call.1} parent=1 // pred_region
      _
    $region17: #{tpu_custom_call.1} parent=1 // pred_fallthru
      _
    // Predicated region
    $region18: #{tpu_custom_call.1} parent=1 // pred_check
      _
    $region19: #{tpu_custom_call.1} parent=1 // pred_check_branch
      %44 = sbr.rel (0) target = $region21
    $region20: #{tpu_custom_call.1} parent=1 // pred_region
      _
    $region21: #{tpu_custom_call.1} parent=1 // pred_fallthru
      _
    // Predicated region
    $region22: #{tpu_custom_call.1} parent=1 // pred_check
      _
    $region23: #{tpu_custom_call.1} parent=1 // pred_check_branch
      %46 = sbr.rel (0) target = $region25
    $region24: #{tpu_custom_call.1} parent=1 // pred_region
      %48 = dma.done [#allocation3], 768
    $region25: #{tpu_custom_call.1} parent=1 // pred_fallthru
      _
    // Predicated region
    $region26: #{tpu_custom_call.1} parent=1 // pred_check
      _
    $region27: #{tpu_custom_call.1} parent=1 // pred_check_branch
      %50 = sbr.rel (0) target = $region29
    $region28: #{tpu_custom_call.1} parent=1 // pred_region
      %52 = dma.done [#allocation6], 3072
    $region29: #{tpu_custom_call.1} parent=1 // pred_fallthru
      _
    %v54 = vld [vmem:[#allocation2] sm:$0xff]
    %v55 = vld [vmem:[#allocation2 + $0x8] sm:$0xff]
    %v56 = vld [vmem:[#allocation2 + $0x10] sm:$0xff]
    %v57 = vld [vmem:[#allocation2 + $0x18] sm:$0x3]
    %v58 = vld [vmem:[#allocation2 + $0x20] sm:$0x3]
    %v59 = vld [vmem:[#allocation2 + $0x28] sm:$0x3]
    %v60 = vpack.c.bf16 %v57, %v54
    %v61 = vpack.c.bf16 %v58, %v55
    %v62 = vpack.c.bf16 %v59, %v56
    %v63 = vld [vmem:[%s1] sm:$0xff]
    %v64 = vld [vmem:[%s1 + $0x8] sm:$0x3]
    %v65 = vpack.c.bf16 %v64, %v63
    %v66 = vld [vmem:[#allocation5] sm:$0xf]
    %v67 = vld [vmem:[#allocation5 + $0x4] sm:$0xf]
    %v68 = vld [vmem:[#allocation5 + $0x8] sm:$0xf]
    %v69 = vld [vmem:[#allocation5 + $0xc] sm:$0xf]
    %v70 = vld [vmem:[#allocation5 + $0x10] sm:$0xf]
    %v71 = vld [vmem:[#allocation5 + $0x14] sm:$0xf]
    %v72 = vld [vmem:[#allocation5 + $0x18] sm:$0xf]
    %v73 = vld [vmem:[#allocation5 + $0x1c] sm:$0xf]
    %v74 = vld [vmem:[#allocation5 + $0x20] sm:$0xf]
    %v75 = vld [vmem:[#allocation5 + $0x24] sm:$0xf]
    %v76 = vld [vmem:[#allocation5 + $0x28] sm:$0xf]
    %v77 = vld [vmem:[#allocation5 + $0x2c] sm:$0xf]
    %v78 = vld [vmem:[#allocation5 + $0x30] sm:$0xf]
    %v79 = vld [vmem:[#allocation5 + $0x34] sm:$0xf]
    %v80 = vld [vmem:[#allocation5 + $0x38] sm:$0xf]
    %v81 = vld [vmem:[#allocation5 + $0x3c] sm:$0xf]
    %v82 = vld [vmem:[#allocation5 + $0x40] sm:$0xf]
    %v83 = vld [vmem:[#allocation5 + $0x44] sm:$0xf]
    %v84 = vld [vmem:[#allocation5 + $0x48] sm:$0xf]
    %v85 = vld [vmem:[#allocation5 + $0x4c] sm:$0xf]
    %v86 = vld [vmem:[#allocation5 + $0x50] sm:$0xf]
    %v87 = vld [vmem:[#allocation5 + $0x54] sm:$0xf]
    %v88 = vld [vmem:[#allocation5 + $0x58] sm:$0xf]
    %v89 = vld [vmem:[#allocation5 + $0x5c] sm:$0xf]
    %v90 = vld [vmem:[#allocation5 + $0x60] sm:$0xf]
    %v91 = vld [vmem:[#allocation5 + $0x64] sm:$0xf]
    %v92 = vld [vmem:[#allocation5 + $0x68] sm:$0xf]
    %v93 = vld [vmem:[#allocation5 + $0x6c] sm:$0xf]
    %v94 = vld [vmem:[#allocation5 + $0x70] sm:$0xf]
    %v95 = vld [vmem:[#allocation5 + $0x74] sm:$0xf]
    %v96 = vld [vmem:[#allocation5 + $0x78] sm:$0xf]
    %v97 = vld [vmem:[#allocation5 + $0x7c] sm:$0xf]
    %v98 = vld [vmem:[#allocation5 + $0x80] sm:$0xf]
    %v99 = vld [vmem:[#allocation5 + $0x84] sm:$0xf]
    %v100 = vld [vmem:[#allocation5 + $0x88] sm:$0xf]
    %v101 = vld [vmem:[#allocation5 + $0x8c] sm:$0xf]
    %v102 = vld [vmem:[#allocation5 + $0x90] sm:$0xf]
    %v103 = vld [vmem:[#allocation5 + $0x94] sm:$0xf]
    %v104 = vld [vmem:[#allocation5 + $0x98] sm:$0xf]
    %v105 = vld [vmem:[#allocation5 + $0x9c] sm:$0xf]
    %v106 = vld [vmem:[#allocation5 + $0xa0] sm:$0xf]
    %v107 = vld [vmem:[#allocation5 + $0xa4] sm:$0xf]
    %v108 = vld [vmem:[#allocation5 + $0xa8] sm:$0xf]
    %v109 = vld [vmem:[#allocation5 + $0xac] sm:$0xf]
    %v110 = vld [vmem:[#allocation5 + $0xb0] sm:$0xf]
    %v111 = vld [vmem:[#allocation5 + $0xb4] sm:$0xf]
    %v112 = vld [vmem:[#allocation5 + $0xb8] sm:$0xf]
    %v113 = vld [vmem:[#allocation5 + $0xbc] sm:$0x3]
    %v114 = vld [vmem:[%s3] sm:$0x3]
    %vm115 = vcmask 31744
    %v117 = vsel %vm115, %v65, 0
    %vm119 = vcmask 1041408
    %v121 = vsel %vm119, %v114, 0
    %123 = vmatpush.bf16.msra.mxu0 0
    %124 = vmatpush.bf16.msra.mxu0 0
    %125 = vmatpush.bf16.msra.mxu0 0
    %126 = vmatpush.bf16.msra.mxu0 0
    %127 = vmatpush.bf16.msra.mxu0 0
    %128 = vmatpush.bf16.msra.mxu0 0
    %129 = vmatpush.bf16.msra.mxu0 0
    %130 = vmatpush.bf16.msra.mxu0 %v121
    %131 = vmatmul.bf16.gmra.mxu0 %v117
    %v132 = vpop.f32.mrf.mxu0
    %v133 = vadd.f32 0.0, %v132
    %v134 = vpop.f32.mrf.mxu0
    %v135 = vadd.f32 0.0, %v134
    %136 = vdwg.mxu0
    %v185 = vunpack.c.l.b16 %v66
    %v186 = vunpack.c.l.b16 %v67
    %v187 = vunpack.c.l.b16 %v68
    %v188 = vunpack.c.l.b16 %v69
    %v189 = vunpack.c.l.b16 %v70
    %v190 = vunpack.c.l.b16 %v71
    %v191 = vunpack.c.l.b16 %v72
    %v192 = vunpack.c.l.b16 %v73
    %v193 = vunpack.c.l.b16 %v74
    %v194 = vunpack.c.l.b16 %v75
    %v195 = vunpack.c.l.b16 %v76
    %v196 = vunpack.c.l.b16 %v77
    %v197 = vunpack.c.l.b16 %v78
    %v198 = vunpack.c.l.b16 %v79
    %v199 = vunpack.c.l.b16 %v80
    %v200 = vunpack.c.l.b16 %v81
    %v201 = vunpack.c.l.b16 %v82
    %v202 = vunpack.c.l.b16 %v83
    %v203 = vunpack.c.l.b16 %v84
    %v204 = vunpack.c.l.b16 %v85
    %v205 = vunpack.c.l.b16 %v86
    %v206 = vunpack.c.l.b16 %v87
    %v207 = vunpack.c.l.b16 %v88
    %v208 = vunpack.c.l.b16 %v89
    %v209 = vunpack.c.l.b16 %v90
    %v210 = vunpack.c.l.b16 %v91
    %v211 = vunpack.c.l.b16 %v92
    %v212 = vunpack.c.l.b16 %v93
    %v213 = vunpack.c.l.b16 %v94
    %v214 = vunpack.c.l.b16 %v95
    %v215 = vunpack.c.l.b16 %v96
    %v216 = vunpack.c.l.b16 %v97
    %v217 = vunpack.c.l.b16 %v98
    %v218 = vunpack.c.l.b16 %v99
    %v219 = vunpack.c.l.b16 %v100
    %v220 = vunpack.c.l.b16 %v101
    %v221 = vunpack.c.l.b16 %v102
    %v222 = vunpack.c.l.b16 %v103
    %v223 = vunpack.c.l.b16 %v104
    %v224 = vunpack.c.l.b16 %v105
    %v225 = vunpack.c.l.b16 %v106
    %v226 = vunpack.c.l.b16 %v107
    %v227 = vunpack.c.l.b16 %v108
    %v228 = vunpack.c.l.b16 %v109
    %v229 = vunpack.c.l.b16 %v110
    %v230 = vunpack.c.l.b16 %v111
    %v231 = vunpack.c.l.b16 %v112
    %v232 = vunpack.c.l.b16 %v113
    %v233 = vpack.c.b16 %v186, %v185
    %v234 = vpack.c.b16 %v188, %v187
    %v235 = vpack.c.b16 %v190, %v189
    %v236 = vpack.c.b16 %v192, %v191
    %v237 = vpack.c.b16 %v194, %v193
    %v238 = vpack.c.b16 %v196, %v195
    %v239 = vpack.c.b16 %v198, %v197
    %v240 = vpack.c.b16 %v200, %v199
    %v241 = vpack.c.b16 %v202, %v201
    %v242 = vpack.c.b16 %v204, %v203
    %v243 = vpack.c.b16 %v206, %v205
    %v244 = vpack.c.b16 %v208, %v207
    %v245 = vpack.c.b16 %v210, %v209
    %v246 = vpack.c.b16 %v212, %v211
    %v247 = vpack.c.b16 %v214, %v213
    %v248 = vpack.c.b16 %v216, %v215
    %v249 = vpack.c.b16 %v218, %v217
    %v250 = vpack.c.b16 %v220, %v219
    %v251 = vpack.c.b16 %v222, %v221
    %v252 = vpack.c.b16 %v224, %v223
    %v253 = vpack.c.b16 %v226, %v225
    %v254 = vpack.c.b16 %v228, %v227
    %v255 = vpack.c.b16 %v230, %v229
    %v256 = vpack.c.b16 %v232, %v231
    %vm280 = vcmask 1014784
    %v282 = vsel %vm280, %v62, 0
    %vm284 = vcmask 1045504
    %v286 = vsel %vm284, %v256, 0
    %288 = vmatpush.bf16.msra.mxu0 %v240
    %289 = vmatpush.bf16.msra.mxu0 %v239
    %290 = vmatpush.bf16.msra.mxu0 %v238
    %291 = vmatpush.bf16.msra.mxu0 %v237
    %292 = vmatpush.bf16.msra.mxu0 %v236
    %293 = vmatpush.bf16.msra.mxu0 %v235
    %294 = vmatpush.bf16.msra.mxu0 %v234
    %295 = vmatpush.bf16.msra.mxu0 %v233
    %296 = vmatmul.bf16.gmra.mxu0 %v60
    %v297 = vpop.f32.mrf.mxu0
    %v298 = vadd.f32 %v133, %v297
    %v299 = vpop.f32.mrf.mxu0
    %v300 = vadd.f32 %v135, %v299
    %301 = vdwg.mxu0
    %302 = vmatpush.bf16.msra.mxu0 %v248
    %303 = vmatpush.bf16.msra.mxu0 %v247
    %304 = vmatpush.bf16.msra.mxu0 %v246
    %305 = vmatpush.bf16.msra.mxu0 %v245
    %306 = vmatpush.bf16.msra.mxu0 %v244
    %307 = vmatpush.bf16.msra.mxu0 %v243
    %308 = vmatpush.bf16.msra.mxu0 %v242
    %309 = vmatpush.bf16.msra.mxu0 %v241
    %310 = vmatmul.bf16.gmra.mxu0 %v61
    %v311 = vpop.f32.mrf.mxu0
    %v312 = vadd.f32 %v298, %v311
    %v313 = vpop.f32.mrf.mxu0
    %v314 = vadd.f32 %v300, %v313
    %315 = vdwg.mxu0
    %316 = vmatpush.bf16.msra.mxu0 %v286
    %317 = vmatpush.bf16.msra.mxu0 %v255
    %318 = vmatpush.bf16.msra.mxu0 %v254
    %319 = vmatpush.bf16.msra.mxu0 %v253
    %320 = vmatpush.bf16.msra.mxu0 %v252
    %321 = vmatpush.bf16.msra.mxu0 %v251
    %322 = vmatpush.bf16.msra.mxu0 %v250
    %323 = vmatpush.bf16.msra.mxu0 %v249
    %324 = vmatmul.bf16.gmra.mxu0 %v282
    %v325 = vpop.f32.mrf.mxu0
    %v326 = vadd.f32 %v312, %v325
    %v327 = vpop.f32.mrf.mxu0
    %v328 = vadd.f32 %v314, %v327
    %329 = vdwg.mxu0
    %v330 = vld [vmem:[%s4] sm:$0x1]
    %v332 = vperm.slane %v330, 0
    %v334 = vadd.f32 %v326, %v332
    %v335 = vadd.f32 %v328, %v332
    %v336 = vmax.f32 %v334, 0.0
    %v337 = vmax.f32 %v335, 0.0
    %338 = vst [vmem:[#allocation7] sm:$0xff] %v336
    %339 = vst [vmem:[#allocation7 + $0x8] sm:$0x3] %v337
    // Predicated region
    $region30: #{tpu_custom_call.1} parent=1 // pred_check
      _
    $region31: #{tpu_custom_call.1} parent=1 // pred_check_branch
      %341 = sbr.rel (0) target = $region33
    $region32: #{tpu_custom_call.1} parent=1 // pred_region
      %343 = vsyncadd [#allocation4], 0
      %s344 = sshll.u32 [#allocation7], 4
      %s345 = int_to_ptr.vmem [resolvable:$true] %s344
      %s346 = sshll.u32 %s5, 4
      %s347 = int_to_ptr.hbm [resolvable:$true] %s346
      %352 = dma.vmem_to_hbm [thread:$0]  %s345, 256, %s347, [#allocation4], 128, 128, 8
    $region33: #{tpu_custom_call.1} parent=1 // pred_fallthru
      _
    // Predicated region
    $region34: #{tpu_custom_call.1} parent=1 // pred_check
      _
    $region35: #{tpu_custom_call.1} parent=1 // pred_check_branch
      %354 = sbr.rel (0) target = $region37
    $region36: #{tpu_custom_call.1} parent=1 // pred_region
      %356 = dma.done [#allocation4], 256
    $region37: #{tpu_custom_call.1} parent=1 // pred_fallthru
      _
    %357 = vsyncpa [#allocation3], 1
    %358 = vsyncpa [#allocation6], 1
    %359 = vsyncpa [#allocation4], 1

</llo_original>
